<compile_context>
chip_gen: v7x
topology: tpu7x:2x2x1
jax: 0.10.0
libtpu: 0.0.40
codegen_flags: <defaults>
</compile_context>

<pallas_src>
import jax
import jax.numpy as jnp
from jax.experimental import pallas as pl
from jax.experimental.pallas import tpu as pltpu


def _round_up(x: int, m: int) -> int:
    return ((x + m - 1) // m) * m


def _fusion_kernel_fused(tab_ref, wx_ref, w_ref, b_ref, o_ref):
    # y = cat([tab, wx], -1) @ Wt + b, as a single K = 2C MXU pass.
    x = jnp.concatenate([tab_ref[...], wx_ref[...]], axis=-1)       # (TM, 2C)
    acc = jnp.dot(x, w_ref[...], preferred_element_type=jnp.float32)
    o_ref[...] = (acc + b_ref[...]).astype(o_ref.dtype)


def _fusion_kernel_split(tab_ref, wx_ref, w_ref, b_ref, o_ref):
    # Fallback: two K = C dots against the top / bottom halves of Wt.
    c = tab_ref.shape[-1]
    acc = jnp.dot(tab_ref[...], w_ref[:c, :],
                  preferred_element_type=jnp.float32)
    acc = acc + jnp.dot(wx_ref[...], w_ref[c:, :],
                        preferred_element_type=jnp.float32)
    o_ref[...] = (acc + b_ref[...]).astype(o_ref.dtype)


def deep_summit_fusion(logits_tab, logits_weather, fusion_weight, fusion_bias,
                       *, tm=512, compute_dtype=None):
    """Pallas implementation of DeepSummit.forward's fusion head.

    logits_tab:     [B, C]   per-branch logits (SAINT output stand-in)
    logits_weather: [B, C]   per-branch logits (Stormer output stand-in)
    fusion_weight:  [C, 2C]  nn.Linear weight, PyTorch [out, in] layout
    fusion_bias:    [C]
    tm:             target batch tile (multiple of 8; clamped for small B)
    compute_dtype:  optional (e.g. jnp.bfloat16) dtype for the streamed MXU
                    operands; accumulation / bias add stay f32.
    returns:        [B, C]   fused logits
    """
    B, C = logits_tab.shape
    assert logits_weather.shape == (B, C)
    assert fusion_weight.shape == (C, 2 * C)
    assert fusion_bias.shape == (C,)
    out_dtype = logits_tab.dtype

    # One-time parameter layout (precompute at init in production):
    #   Wt = W.T -> [2C, C] so the kernel does x @ Wt; bias as a [1, C] row.
    w_t = fusion_weight.T
    b_2d = fusion_bias.astype(jnp.float32).reshape(1, C)

    tab, wx = logits_tab, logits_weather
    if compute_dtype is not None:
        # Only pays off when this cast fuses into the upstream producer (or the
        # logits already arrive in bf16); accumulation stays f32 either way.
        tab = tab.astype(compute_dtype)
        wx = wx.astype(compute_dtype)
        w_t = w_t.astype(compute_dtype)

    # Batch tile: large for HBM bandwidth, clamped for small B, and split so
    # v7x's two TensorCores both get a tile once B >= 16.
    TM = _round_up(min(tm, B), 8)
    if pl.cdiv(B, TM) < 2 and B >= 16:
        TM = _round_up(pl.cdiv(B, 2), 8)
    grid = (pl.cdiv(B, TM),)

    # Explicit VMEM budget (v5e's scoped default is only 16 MiB; v7x physical
    # VMEM is 64 MiB, so cap there).
    in_bytes = jnp.dtype(tab.dtype).itemsize
    out_bytes = jnp.dtype(out_dtype).itemsize
    vmem_est = (2 * 2 * TM * C * in_bytes              # tab + wx, double-buffered
                + 2 * TM * C * out_bytes               # output, double-buffered
                + 2 * (2 * C * C * in_bytes + C * 4)   # weight + bias
                + (1 << 20))                           # scratch slack
    vmem_limit = int(min(64 * 1024 * 1024, max(32 * 1024 * 1024, 2 * vmem_est)))

    def build(kernel, resident_kwargs):
        return pl.pallas_call(
            kernel,
            out_shape=jax.ShapeDtypeStruct((B, C), out_dtype),
            grid=grid,
            in_specs=[
                pl.BlockSpec((TM, C), lambda i: (i, 0)),             # tab tile
                pl.BlockSpec((TM, C), lambda i: (i, 0)),             # weather tile
                pl.BlockSpec((2 * C, C), lambda i: (0, 0), **resident_kwargs),
                pl.BlockSpec((1, C), lambda i: (0, 0), **resident_kwargs),
            ],
            out_specs=pl.BlockSpec((TM, C), lambda i: (i, 0)),
            compiler_params=pltpu.CompilerParams(
                dimension_semantics=("parallel",),
                vmem_limit_bytes=vmem_limit),
        )

    # Preferred config first (fused K=2C dot, single-buffered resident weight);
    # degrade gracefully if this Mosaic version rejects minor-dim concat or
    # pipeline_mode=Buffered(1).
    configs = (
        (_fusion_kernel_fused, dict(pipeline_mode=pl.Buffered(1))),
        (_fusion_kernel_fused, {}),
        (_fusion_kernel_split, {}),
    )
    last_err = None
    for kernel, resident_kwargs in configs:
        try:
            out = build(kernel, resident_kwargs)(tab, wx, w_t, b_2d)
            return jax.block_until_ready(out)
        except Exception as e:  # version-dependent lowering support
            last_err = e
    raise last_err


if __name__ == "__main__":
    key = jax.random.PRNGKey(0)
    k_tab, k_wx, k_w, k_b = jax.random.split(key, 4)

    B = 8             # batch
    num_classes = 32  # per-branch logit width

    # Per-branch logits: stand-ins for the SAINT / Stormer backbone outputs.
    logits_tab = jax.random.normal(k_tab, (B, num_classes), dtype=jnp.float32)
    logits_weather = jax.random.normal(k_wx, (B, num_classes), dtype=jnp.float32)

    # nn.Linear(2*num_classes, num_classes) parameters (PyTorch [out, in]).
    fan_in = 2 * num_classes
    bound = 1.0 / (fan_in ** 0.5)
    fusion_weight = jax.random.uniform(
        k_w, (num_classes, 2 * num_classes), minval=-bound, maxval=bound,
        dtype=jnp.float32)
    fusion_bias = jax.random.uniform(
        k_b, (num_classes,), minval=-bound, maxval=bound, dtype=jnp.float32)

    # Reference (torch.cat + nn.Linear semantics) in plain JAX.
    cat = jnp.concatenate([logits_tab, logits_weather], axis=1)
    ref = cat @ fusion_weight.T + fusion_bias

    # Exact-precision path.
    out = jax.block_until_ready(
        deep_summit_fusion(logits_tab, logits_weather,
                           fusion_weight, fusion_bias))
    assert out.shape == (B, num_classes)
    assert jnp.allclose(out, ref, atol=1e-5, rtol=1e-5)

    # bf16-streaming production path (looser tolerance by construction).
    out_bf16 = jax.block_until_ready(
        deep_summit_fusion(logits_tab, logits_weather,
                           fusion_weight, fusion_bias,
                           compute_dtype=jnp.bfloat16))
    assert out_bf16.shape == (B, num_classes)
    assert jnp.allclose(out_bf16, ref, atol=5e-2, rtol=5e-2)

    print("KERNEL_OK")
</pallas_src>

<mosaic_0001>
module attributes {stable_mosaic.version = 11 : i64} {
  func.func @_fusion_kernel_fused(%arg0: i32, %arg1: memref<8x32xf32, #tpu.memory_space<vmem>>, %arg2: memref<8x32xf32, #tpu.memory_space<vmem>>, %arg3: memref<64x32xf32, #tpu.memory_space<vmem>>, %arg4: memref<1x32xf32, #tpu.memory_space<vmem>>, %arg5: memref<8x32xf32, #tpu.memory_space<vmem>>) attributes {dimension_semantics = [#tpu.dimension_semantics<parallel>], iteration_bounds = array<i64: 1>, scalar_prefetch = 0 : i64, scratch_operands = 0 : i64, tpu.core_type = #tpu.core_type<tc>, window_params = [{transform_indices = @transform_0, window_bounds = array<i64: 8, 32>}, {transform_indices = @transform_1, window_bounds = array<i64: 8, 32>}, {pipeline_mode = #tpu.pipeline_mode<synchronous>, transform_indices = @transform_2, window_bounds = array<i64: 64, 32>}, {pipeline_mode = #tpu.pipeline_mode<synchronous>, transform_indices = @transform_3, window_bounds = array<i64: 1, 32>}, {transform_indices = @transform_4, window_bounds = array<i64: 8, 32>}]} {
    %c0 = arith.constant 0 : index
    %c0_0 = arith.constant 0 : index
    %0 = vector.load %arg1[%c0, %c0_0] : memref<8x32xf32, #tpu.memory_space<vmem>>, vector<8x32xf32>
    %c0_1 = arith.constant 0 : index
    %c0_2 = arith.constant 0 : index
    %1 = vector.load %arg2[%c0_1, %c0_2] : memref<8x32xf32, #tpu.memory_space<vmem>>, vector<8x32xf32>
    %2 = tpu.concatenate %0, %1 in 1 : vector<8x32xf32>, vector<8x32xf32> -> vector<8x64xf32>
    %c0_3 = arith.constant 0 : index
    %c0_4 = arith.constant 0 : index
    %3 = vector.load %arg3[%c0_3, %c0_4] : memref<64x32xf32, #tpu.memory_space<vmem>>, vector<64x32xf32>
    %cst = arith.constant dense<0.000000e+00> : vector<8x32xf32>
    %4 = tpu.matmul %2, %3, %cst {dimension_numbers = #tpu.dot_dimension_numbers<[1], [0], [0], [1], [0, 0, 1, 1], [], []>} : vector<8x64xf32>, vector<64x32xf32>, vector<8x32xf32> -> vector<8x32xf32>
    %c0_5 = arith.constant 0 : index
    %c0_6 = arith.constant 0 : index
    %5 = vector.load %arg4[%c0_5, %c0_6] : memref<1x32xf32, #tpu.memory_space<vmem>>, vector<1x32xf32>
    %6 = vector.broadcast %5 : vector<1x32xf32> to vector<8x32xf32>
    %7 = arith.addf %4, %6 : vector<8x32xf32>
    %c0_7 = arith.constant 0 : index
    %c0_8 = arith.constant 0 : index
    %8 = vector.load %arg5[%c0_7, %c0_8] : memref<8x32xf32, #tpu.memory_space<vmem>>, vector<8x32xf32>
    tpu.vector_store %arg5[%c0_7, %c0_8], %7 {strides = array<i32>} : memref<8x32xf32, #tpu.memory_space<vmem>>, vector<8x32xf32>,
    return
  }
  func.func @transform_0(%arg0: i32) -> (i32, i32) {
    %c0_i32 = arith.constant 0 : i32
    %c0_i32_0 = arith.constant 0 : i32
    return %arg0, %c0_i32 : i32, i32
  }
  func.func @transform_1(%arg0: i32) -> (i32, i32) {
    %c0_i32 = arith.constant 0 : i32
    %c0_i32_0 = arith.constant 0 : i32
    return %arg0, %c0_i32 : i32, i32
  }
  func.func @transform_2(%arg0: i32) -> (i32, i32) {
    %c0_i32 = arith.constant 0 : i32
    %c0_i32_0 = arith.constant 0 : i32
    %c0_i32_1 = arith.constant 0 : i32
    return %c0_i32, %c0_i32_0 : i32, i32
  }
  func.func @transform_3(%arg0: i32) -> (i32, i32) {
    %c0_i32 = arith.constant 0 : i32
    %c0_i32_0 = arith.constant 0 : i32
    %c0_i32_1 = arith.constant 0 : i32
    return %c0_i32, %c0_i32_0 : i32, i32
  }
  func.func @transform_4(%arg0: i32) -> (i32, i32) {
    %c0_i32 = arith.constant 0 : i32
    %c0_i32_0 = arith.constant 0 : i32
    return %arg0, %c0_i32 : i32, i32
  }
}

module attributes {stable_mosaic.version = 11 : i64} {
  func.func @_fusion_kernel_fused(%arg0: i32, %arg1: memref<8x32xf32, #tpu.memory_space<vmem>>, %arg2: memref<8x32xf32, #tpu.memory_space<vmem>>, %arg3: memref<64x32xf32, #tpu.memory_space<vmem>>, %arg4: memref<1x32xf32, #tpu.memory_space<vmem>>, %arg5: memref<8x32xf32, #tpu.memory_space<vmem>>) attributes {dimension_semantics = [#tpu.dimension_semantics<parallel>], iteration_bounds = array<i64: 1>, scalar_prefetch = 0 : i64, scratch_operands = 0 : i64, tpu.core_type = #tpu.core_type<tc>, window_params = [{transform_indices = @transform_0, window_bounds = array<i64: 8, 32>}, {transform_indices = @transform_1, window_bounds = array<i64: 8, 32>}, {pipeline_mode = #tpu.pipeline_mode<synchronous>, transform_indices = @transform_2, window_bounds = array<i64: 64, 32>}, {pipeline_mode = #tpu.pipeline_mode<synchronous>, transform_indices = @transform_3, window_bounds = array<i64: 1, 32>}, {transform_indices = @transform_4, window_bounds = array<i64: 8, 32>}]} {
    %c0 = arith.constant 0 : index
    %c0_0 = arith.constant 0 : index
    %0 = vector.load %arg1[%c0, %c0_0] : memref<8x32xf32, #tpu.memory_space<vmem>>, vector<8x32xf32>
    %c0_1 = arith.constant 0 : index
    %c0_2 = arith.constant 0 : index
    %1 = vector.load %arg2[%c0_1, %c0_2] : memref<8x32xf32, #tpu.memory_space<vmem>>, vector<8x32xf32>
    %2 = tpu.concatenate %0, %1 in 1 : vector<8x32xf32>, vector<8x32xf32> -> vector<8x64xf32>
    %c0_3 = arith.constant 0 : index
    %c0_4 = arith.constant 0 : index
    %3 = vector.load %arg3[%c0_3, %c0_4] : memref<64x32xf32, #tpu.memory_space<vmem>>, vector<64x32xf32>
    %cst = arith.constant dense<0.000000e+00> : vector<8x32xf32>
    %4 = tpu.matmul %2, %3, %cst {dimension_numbers = #tpu.dot_dimension_numbers<[1], [0], [0], [1], [0, 0, 1, 1], [], []>} : vector<8x64xf32>, vector<64x32xf32>, vector<8x32xf32> -> vector<8x32xf32>
    %c0_5 = arith.constant 0 : index
    %c0_6 = arith.constant 0 : index
    %5 = vector.load %arg4[%c0_5, %c0_6] : memref<1x32xf32, #tpu.memory_space<vmem>>, vector<1x32xf32>
    %6 = vector.broadcast %5 : vector<1x32xf32> to vector<8x32xf32>
    %7 = arith.addf %4, %6 : vector<8x32xf32>
    %c0_7 = arith.constant 0 : index
    %c0_8 = arith.constant 0 : index
    %8 = vector.load %arg5[%c0_7, %c0_8] : memref<8x32xf32, #tpu.memory_space<vmem>>, vector<8x32xf32>
    tpu.vector_store %arg5[%c0_7, %c0_8], %7 {strides = array<i32>} : memref<8x32xf32, #tpu.memory_space<vmem>>, vector<8x32xf32>,
    return
  }
  func.func @transform_0(%arg0: i32) -> (i32, i32) {
    %c0_i32 = arith.constant 0 : i32
    %c0_i32_0 = arith.constant 0 : i32
    return %arg0, %c0_i32 : i32, i32
  }
  func.func @transform_1(%arg0: i32) -> (i32, i32) {
    %c0_i32 = arith.constant 0 : i32
    %c0_i32_0 = arith.constant 0 : i32
    return %arg0, %c0_i32 : i32, i32
  }
  func.func @transform_2(%arg0: i32) -> (i32, i32) {
    %c0_i32 = arith.constant 0 : i32
    %c0_i32_0 = arith.constant 0 : i32
    %c0_i32_1 = arith.constant 0 : i32
    return %c0_i32, %c0_i32_0 : i32, i32
  }
  func.func @transform_3(%arg0: i32) -> (i32, i32) {
    %c0_i32 = arith.constant 0 : i32
    %c0_i32_0 = arith.constant 0 : i32
    %c0_i32_1 = arith.constant 0 : i32
    return %c0_i32, %c0_i32_0 : i32, i32
  }
  func.func @transform_4(%arg0: i32) -> (i32, i32) {
    %c0_i32 = arith.constant 0 : i32
    %c0_i32_0 = arith.constant 0 : i32
    return %arg0, %c0_i32 : i32, i32
  }
}

module attributes {stable_mosaic.version = 11 : i64} {
  func.func @_fusion_kernel_split(%arg0: i32, %arg1: memref<8x32xf32, #tpu.memory_space<vmem>>, %arg2: memref<8x32xf32, #tpu.memory_space<vmem>>, %arg3: memref<64x32xf32, #tpu.memory_space<vmem>>, %arg4: memref<1x32xf32, #tpu.memory_space<vmem>>, %arg5: memref<8x32xf32, #tpu.memory_space<vmem>>) attributes {dimension_semantics = [#tpu.dimension_semantics<parallel>], iteration_bounds = array<i64: 1>, scalar_prefetch = 0 : i64, scratch_operands = 0 : i64, tpu.core_type = #tpu.core_type<tc>, window_params = [{transform_indices = @transform_0, window_bounds = array<i64: 8, 32>}, {transform_indices = @transform_1, window_bounds = array<i64: 8, 32>}, {pipeline_mode = #tpu.pipeline_mode<synchronous>, transform_indices = @transform_2, window_bounds = array<i64: 64, 32>}, {pipeline_mode = #tpu.pipeline_mode<synchronous>, transform_indices = @transform_3, window_bounds = array<i64: 1, 32>}, {transform_indices = @transform_4, window_bounds = array<i64: 8, 32>}]} {
    %c0 = arith.constant 0 : index
    %c0_0 = arith.constant 0 : index
    %0 = vector.load %arg1[%c0, %c0_0] : memref<8x32xf32, #tpu.memory_space<vmem>>, vector<8x32xf32>
    %c0_1 = arith.constant 0 : index
    %c0_2 = arith.constant 0 : index
    %1 = vector.load %arg3[%c0_1, %c0_2] : memref<64x32xf32, #tpu.memory_space<vmem>>, vector<32x32xf32>
    %cst = arith.constant dense<0.000000e+00> : vector<8x32xf32>
    %2 = tpu.matmul %0, %1, %cst {dimension_numbers = #tpu.dot_dimension_numbers<[1], [0], [0], [1], [0, 0, 1, 1], [], []>} : vector<8x32xf32>, vector<32x32xf32>, vector<8x32xf32> -> vector<8x32xf32>
    %c0_3 = arith.constant 0 : index
    %c0_4 = arith.constant 0 : index
    %3 = vector.load %arg2[%c0_3, %c0_4] : memref<8x32xf32, #tpu.memory_space<vmem>>, vector<8x32xf32>
    %c32 = arith.constant 32 : index
    %c0_5 = arith.constant 0 : index
    %4 = vector.load %arg3[%c32, %c0_5] : memref<64x32xf32, #tpu.memory_space<vmem>>, vector<32x32xf32>
    %cst_6 = arith.constant dense<0.000000e+00> : vector<8x32xf32>
    %5 = tpu.matmul %3, %4, %cst_6 {dimension_numbers = #tpu.dot_dimension_numbers<[1], [0], [0], [1], [0, 0, 1, 1], [], []>} : vector<8x32xf32>, vector<32x32xf32>, vector<8x32xf32> -> vector<8x32xf32>
    %6 = arith.addf %2, %5 : vector<8x32xf32>
    %c0_7 = arith.constant 0 : index
    %c0_8 = arith.constant 0 : index
    %7 = vector.load %arg4[%c0_7, %c0_8] : memref<1x32xf32, #tpu.memory_space<vmem>>, vector<1x32xf32>
    %8 = vector.broadcast %7 : vector<1x32xf32> to vector<8x32xf32>
    %9 = arith.addf %6, %8 : vector<8x32xf32>
    %c0_9 = arith.constant 0 : index
    %c0_10 = arith.constant 0 : index
    %10 = vector.load %arg5[%c0_9, %c0_10] : memref<8x32xf32, #tpu.memory_space<vmem>>, vector<8x32xf32>
    tpu.vector_store %arg5[%c0_9, %c0_10], %9 {strides = array<i32>} : memref<8x32xf32, #tpu.memory_space<vmem>>, vector<8x32xf32>,
    return
  }
  func.func @transform_0(%arg0: i32) -> (i32, i32) {
    %c0_i32 = arith.constant 0 : i32
    %c0_i32_0 = arith.constant 0 : i32
    return %arg0, %c0_i32 : i32, i32
  }
  func.func @transform_1(%arg0: i32) -> (i32, i32) {
    %c0_i32 = arith.constant 0 : i32
    %c0_i32_0 = arith.constant 0 : i32
    return %arg0, %c0_i32 : i32, i32
  }
  func.func @transform_2(%arg0: i32) -> (i32, i32) {
    %c0_i32 = arith.constant 0 : i32
    %c0_i32_0 = arith.constant 0 : i32
    %c0_i32_1 = arith.constant 0 : i32
    return %c0_i32, %c0_i32_0 : i32, i32
  }
  func.func @transform_3(%arg0: i32) -> (i32, i32) {
    %c0_i32 = arith.constant 0 : i32
    %c0_i32_0 = arith.constant 0 : i32
    %c0_i32_1 = arith.constant 0 : i32
    return %c0_i32, %c0_i32_0 : i32, i32
  }
  func.func @transform_4(%arg0: i32) -> (i32, i32) {
    %c0_i32 = arith.constant 0 : i32
    %c0_i32_0 = arith.constant 0 : i32
    return %arg0, %c0_i32 : i32, i32
  }
}

</mosaic_0001>

<llo_original>
// kernel: tpu_custom_call.1
$region0: #{tpu_custom_call.1}
  #allocation0 [shape = 'u32[]', space=smem, size = 0x4, offset = 0x4, fixed_abs, tag = 'smem constant byte address 0x4 - core index']
  #allocation1 [shape = 'u32[144,128]{1,0:T(1,128)}', space=vmem, size = 0x12000, scoped, tag = 'internal scratch']
  %s0 = inlined_call_operand.vmem [shape: f32[8,32], index: 0, kind: input, shape index: {}]
  %s1 = inlined_call_operand.vmem [shape: f32[8,32], index: 1, kind: input, shape index: {}]
  %s2 = inlined_call_operand.vmem [shape: f32[64,32], index: 2, kind: input, shape index: {}]
  %s3 = inlined_call_operand.vmem [shape: f32[1,32], index: 3, kind: input, shape index: {}]
  %s4 = inlined_call_operand.hbm [shape: f32[8,32], index: 4, kind: output, shape index: {}]
  %s5 = sld [smem:[#allocation0]]
  $region26: #{tpu_custom_call.1} parent=0
    _
  %s7 = ssub.s32 1, %s5
  %s8 = scalar_select 0, %s7, %s5
  $region1: #{tpu_custom_call.1} parent=0
    #allocation2 [shape = 'u8[4096]{0}', space=vmem, size = 0x1000, scoped, tag = 'output window, operand 0, single buffered']
    #allocation3 [shape = 's32[1]{0}', space=sflag, size = 0x4, scoped, tag = 'scoped memory for tpu_custom_call.1']
    %9 = vsyncpa [#allocation3], 0
    // Predicated region
    $region2: #{tpu_custom_call.1} parent=1 // pred_check
      _
    $region3: #{tpu_custom_call.1} parent=1 // pred_check_branch
      %11 = sbr.rel (0) target = $region5
    $region4: #{tpu_custom_call.1} parent=1 // pred_region
      _
    $region5: #{tpu_custom_call.1} parent=1 // pred_fallthru
      _
    // Predicated region
    $region6: #{tpu_custom_call.1} parent=1 // pred_check
      _
    $region7: #{tpu_custom_call.1} parent=1 // pred_check_branch
      %13 = sbr.rel (0) target = $region9
    $region8: #{tpu_custom_call.1} parent=1 // pred_region
      _
    $region9: #{tpu_custom_call.1} parent=1 // pred_fallthru
      _
    // Predicated region
    $region10: #{tpu_custom_call.1} parent=1 // pred_check
      _
    $region11: #{tpu_custom_call.1} parent=1 // pred_check_branch
      %15 = sbr.rel (0) target = $region13
    $region12: #{tpu_custom_call.1} parent=1 // pred_region
      _
    $region13: #{tpu_custom_call.1} parent=1 // pred_fallthru
      _
    // Predicated region
    $region14: #{tpu_custom_call.1} parent=1 // pred_check
      _
    $region15: #{tpu_custom_call.1} parent=1 // pred_check_branch
      %17 = sbr.rel (0) target = $region17
    $region16: #{tpu_custom_call.1} parent=1 // pred_region
      _
    $region17: #{tpu_custom_call.1} parent=1 // pred_fallthru
      _
    %v18 = vld [vmem:[%s0] sm:$0xff]
    %v19 = vld [vmem:[%s1] sm:$0xff]
    %21 = vrot.lane.b32.xlu0 %v19, 32
    %v22 = vpop.permute.xlu0 %21
    %vm24 = vcmask 261120
    %v25 = vsel %vm24, %v18, %v22
    %v26 = vld [vmem:[%s2] sm:$0xff]
    %v27 = vld [vmem:[%s2 + $0x8] sm:$0xff]
    %v28 = vld [vmem:[%s2 + $0x10] sm:$0xff]
    %v29 = vld [vmem:[%s2 + $0x18] sm:$0xff]
    %v30 = vld [vmem:[%s2 + $0x20] sm:$0xff]
    %v31 = vld [vmem:[%s2 + $0x28] sm:$0xff]
    %v32 = vld [vmem:[%s2 + $0x30] sm:$0xff]
    %v33 = vld [vmem:[%s2 + $0x38] sm:$0xff]
    %v34 = vld [vmem:[%s3] sm:$0x1]
    %v36 = vlaneseq
    %v37 = vshrl.u32 %v36, 7
    %v38 = vsub.s32 0, %v37
    %v39 = vrot.slane %v34, %v38
    %vm41 = vcmask 523264
    %v43 = vsel %vm41, %v25, 0
    %45 = vmatprep.subr.mxu0 0.0
    %46 = vmatpush1.msra.mxu0 %v26
    %47 = vmatprep.subr.mxu0 0.0
    %48 = vmatpush1.msra.mxu0 %v27
    %49 = vmatprep.subr.mxu0 0.0
    %50 = vmatpush1.msra.mxu0 %v28
    %51 = vmatprep.subr.mxu0 0.0
    %52 = vmatpush1.msra.mxu0 %v29
    %53 = vmatprep.subr.mxu0 0.0
    %54 = vmatpush1.msra.mxu0 %v30
    %55 = vmatprep.subr.mxu0 0.0
    %56 = vmatpush1.msra.mxu0 %v31
    %57 = vmatprep.subr.mxu0 0.0
    %58 = vmatpush1.msra.mxu0 %v32
    %59 = vmatprep.subr.mxu0 0.0
    %60 = vmatpush1.msra.mxu0 %v33
    %61 = vmatprep.subr.mxu0 0.0
    %62 = vmatpush1.msra.mxu0 0.0
    %63 = vmatprep.subr.mxu0 0.0
    %64 = vmatpush1.msra.mxu0 0.0
    %65 = vmatprep.subr.mxu0 0.0
    %66 = vmatpush1.msra.mxu0 0.0
    %67 = vmatprep.subr.mxu0 0.0
    %68 = vmatpush1.msra.mxu0 0.0
    %69 = vmatprep.subr.mxu0 0.0
    %70 = vmatpush1.msra.mxu0 0.0
    %71 = vmatprep.subr.mxu0 0.0
    %72 = vmatpush1.msra.mxu0 0.0
    %73 = vmatprep.subr.mxu0 0.0
    %74 = vmatpush1.msra.mxu0 0.0
    %75 = vmatprep.subr.mxu0 0.0
    %76 = vmatpush1.msra.mxu0 0.0
    %77 = vmatprep.subr.mxu0 0.0
    %78 = vmatpush1.msra.mxu0 0.0
    %79 = vmatprep.subr.mxu0 0.0
    %80 = vmatpush1.msra.mxu0 0.0
    %81 = vmatprep.subr.mxu0 0.0
    %82 = vmatpush1.msra.mxu0 0.0
    %83 = vmatprep.subr.mxu0 0.0
    %84 = vmatpush1.msra.mxu0 0.0
    %85 = vmatprep.subr.mxu0 0.0
    %86 = vmatpush1.msra.mxu0 0.0
    %87 = vmatprep.subr.mxu0 0.0
    %88 = vmatpush1.msra.mxu0 0.0
    %89 = vmatprep.subr.mxu0 0.0
    %90 = vmatpush1.msra.mxu0 0.0
    %91 = vmatprep.subr.mxu0 0.0
    %92 = vmatpush1.msra.mxu0 0.0
    %93 = vmatprep.subr.mxu0 0.0
    %94 = vmatpush1.msra.mxu0 0.0
    %95 = vmatprep.subr.mxu0 0.0
    %96 = vmatpush1.msra.mxu0 0.0
    %97 = vmatprep.subr.mxu0 0.0
    %98 = vmatpush1.msra.mxu0 0.0
    %99 = vmatprep.subr.mxu0 0.0
    %100 = vmatpush1.msra.mxu0 0.0
    %101 = vmatprep.subr.mxu0 0.0
    %102 = vmatpush1.msra.mxu0 0.0
    %103 = vmatprep.subr.mxu0 0.0
    %104 = vmatpush1.msra.mxu0 0.0
    %105 = vmatprep.subr.mxu0 0.0
    %106 = vmatpush1.msra.mxu0 0.0
    %107 = vmatprep.subr.mxu0 0.0
    %108 = vmatpush1.msra.mxu0 0.0
    %109 = vmatprep.mubr.f32.mxu0 0.0
    %110 = vmatmul.mubr.f32.gmra.mrb[0].mxu0 %v43
    %v111 = vpop.f32.mrb[0].mxu0
    %v112 = vadd.f32 %v39, %v111
    %v113 = vpop.f32.mrb[0].mxu0
    %114 = vdwg.mxu0
    %115 = vst.msk [vmem:[#allocation2] sm:$0xff] %vm24, %v112
    // Predicated region
    $region18: #{tpu_custom_call.1} parent=1 // pred_check
      _
    $region19: #{tpu_custom_call.1} parent=1 // pred_check_branch
      %117 = sbr.rel (0) target = $region21
    $region20: #{tpu_custom_call.1} parent=1 // pred_region
      %s119 = ssub.s32 128, 128
      %120 = vsyncadd [#allocation3], %s119
      %s122 = sshll.u32 [#allocation2], 4
      %s123 = int_to_ptr.vmem [resolvable:$true] %s122
      %125 = dma.vmem_to_hbm [thread:$0]  %s123, 128, %s4, [#allocation3]
    $region21: #{tpu_custom_call.1} parent=1 // pred_fallthru
      _
    // Predicated region
    $region22: #{tpu_custom_call.1} parent=1 // pred_check
      _
    $region23: #{tpu_custom_call.1} parent=1 // pred_check_branch
      %127 = sbr.rel (0) target = $region25
    $region24: #{tpu_custom_call.1} parent=1 // pred_region
      %128 = dma.done [#allocation3], 128
    $region25: #{tpu_custom_call.1} parent=1 // pred_fallthru
      _
    %129 = vsyncpa [#allocation3], 1

// kernel: tpu_custom_call.1
$region0: #{tpu_custom_call.1}
  #allocation0 [shape = 'u32[]', space=smem, size = 0x4, offset = 0x4, fixed_abs, tag = 'smem constant byte address 0x4 - core index']
  #allocation1 [shape = 'u32[144,128]{1,0:T(1,128)}', space=vmem, size = 0x12000, scoped, tag = 'internal scratch']
  %s0 = inlined_call_operand.vmem [shape: f32[8,32], index: 0, kind: input, shape index: {}]
  %s1 = inlined_call_operand.vmem [shape: f32[8,32], index: 1, kind: input, shape index: {}]
  %s2 = inlined_call_operand.vmem [shape: f32[64,32], index: 2, kind: input, shape index: {}]
  %s3 = inlined_call_operand.vmem [shape: f32[1,32], index: 3, kind: input, shape index: {}]
  %s4 = inlined_call_operand.hbm [shape: f32[8,32], index: 4, kind: output, shape index: {}]
  %s5 = sld [smem:[#allocation0]]
  $region26: #{tpu_custom_call.1} parent=0
    _
  %s7 = ssub.s32 1, %s5
  %s8 = scalar_select 0, %s7, %s5
  $region1: #{tpu_custom_call.1} parent=0
    #allocation2 [shape = 'u8[4096]{0}', space=vmem, size = 0x1000, scoped, tag = 'output window, operand 0, single buffered']
    #allocation3 [shape = 's32[1]{0}', space=sflag, size = 0x4, scoped, tag = 'scoped memory for tpu_custom_call.1']
    %9 = vsyncpa [#allocation3], 0
    // Predicated region
    $region2: #{tpu_custom_call.1} parent=1 // pred_check
      _
    $region3: #{tpu_custom_call.1} parent=1 // pred_check_branch
      %11 = sbr.rel (0) target = $region5
    $region4: #{tpu_custom_call.1} parent=1 // pred_region
      _
    $region5: #{tpu_custom_call.1} parent=1 // pred_fallthru
      _
    // Predicated region
    $region6: #{tpu_custom_call.1} parent=1 // pred_check
      _
    $region7: #{tpu_custom_call.1} parent=1 // pred_check_branch
      %13 = sbr.rel (0) target = $region9
    $region8: #{tpu_custom_call.1} parent=1 // pred_region
      _
    $region9: #{tpu_custom_call.1} parent=1 // pred_fallthru
      _
    // Predicated region
    $region10: #{tpu_custom_call.1} parent=1 // pred_check
      _
    $region11: #{tpu_custom_call.1} parent=1 // pred_check_branch
      %15 = sbr.rel (0) target = $region13
    $region12: #{tpu_custom_call.1} parent=1 // pred_region
      _
    $region13: #{tpu_custom_call.1} parent=1 // pred_fallthru
      _
    // Predicated region
    $region14: #{tpu_custom_call.1} parent=1 // pred_check
      _
    $region15: #{tpu_custom_call.1} parent=1 // pred_check_branch
      %17 = sbr.rel (0) target = $region17
    $region16: #{tpu_custom_call.1} parent=1 // pred_region
      _
    $region17: #{tpu_custom_call.1} parent=1 // pred_fallthru
      _
    %v18 = vld [vmem:[%s0] sm:$0xff]
    %v19 = vld [vmem:[%s1] sm:$0xff]
    %21 = vrot.lane.b32.xlu0 %v19, 32
    %v22 = vpop.permute.xlu0 %21
    %vm24 = vcmask 261120
    %v25 = vsel %vm24, %v18, %v22
    %v26 = vld [vmem:[%s2] sm:$0xff]
    %v27 = vld [vmem:[%s2 + $0x8] sm:$0xff]
    %v28 = vld [vmem:[%s2 + $0x10] sm:$0xff]
    %v29 = vld [vmem:[%s2 + $0x18] sm:$0xff]
    %v30 = vld [vmem:[%s2 + $0x20] sm:$0xff]
    %v31 = vld [vmem:[%s2 + $0x28] sm:$0xff]
    %v32 = vld [vmem:[%s2 + $0x30] sm:$0xff]
    %v33 = vld [vmem:[%s2 + $0x38] sm:$0xff]
    %v34 = vld [vmem:[%s3] sm:$0x1]
    %v36 = vlaneseq
    %v37 = vshrl.u32 %v36, 7
    %v38 = vsub.s32 0, %v37
    %v39 = vrot.slane %v34, %v38
    %vm41 = vcmask 523264
    %v43 = vsel %vm41, %v25, 0
    %45 = vmatprep.subr.mxu0 0.0
    %46 = vmatpush1.msra.mxu0 %v26
    %47 = vmatprep.subr.mxu0 0.0
    %48 = vmatpush1.msra.mxu0 %v27
    %49 = vmatprep.subr.mxu0 0.0
    %50 = vmatpush1.msra.mxu0 %v28
    %51 = vmatprep.subr.mxu0 0.0
    %52 = vmatpush1.msra.mxu0 %v29
    %53 = vmatprep.subr.mxu0 0.0
    %54 = vmatpush1.msra.mxu0 %v30
    %55 = vmatprep.subr.mxu0 0.0
    %56 = vmatpush1.msra.mxu0 %v31
    %57 = vmatprep.subr.mxu0 0.0
    %58 = vmatpush1.msra.mxu0 %v32
    %59 = vmatprep.subr.mxu0 0.0
    %60 = vmatpush1.msra.mxu0 %v33
    %61 = vmatprep.subr.mxu0 0.0
    %62 = vmatpush1.msra.mxu0 0.0
    %63 = vmatprep.subr.mxu0 0.0
    %64 = vmatpush1.msra.mxu0 0.0
    %65 = vmatprep.subr.mxu0 0.0
    %66 = vmatpush1.msra.mxu0 0.0
    %67 = vmatprep.subr.mxu0 0.0
    %68 = vmatpush1.msra.mxu0 0.0
    %69 = vmatprep.subr.mxu0 0.0
    %70 = vmatpush1.msra.mxu0 0.0
    %71 = vmatprep.subr.mxu0 0.0
    %72 = vmatpush1.msra.mxu0 0.0
    %73 = vmatprep.subr.mxu0 0.0
    %74 = vmatpush1.msra.mxu0 0.0
    %75 = vmatprep.subr.mxu0 0.0
    %76 = vmatpush1.msra.mxu0 0.0
    %77 = vmatprep.subr.mxu0 0.0
    %78 = vmatpush1.msra.mxu0 0.0
    %79 = vmatprep.subr.mxu0 0.0
    %80 = vmatpush1.msra.mxu0 0.0
    %81 = vmatprep.subr.mxu0 0.0
    %82 = vmatpush1.msra.mxu0 0.0
    %83 = vmatprep.subr.mxu0 0.0
    %84 = vmatpush1.msra.mxu0 0.0
    %85 = vmatprep.subr.mxu0 0.0
    %86 = vmatpush1.msra.mxu0 0.0
    %87 = vmatprep.subr.mxu0 0.0
    %88 = vmatpush1.msra.mxu0 0.0
    %89 = vmatprep.subr.mxu0 0.0
    %90 = vmatpush1.msra.mxu0 0.0
    %91 = vmatprep.subr.mxu0 0.0
    %92 = vmatpush1.msra.mxu0 0.0
    %93 = vmatprep.subr.mxu0 0.0
    %94 = vmatpush1.msra.mxu0 0.0
    %95 = vmatprep.subr.mxu0 0.0
    %96 = vmatpush1.msra.mxu0 0.0
    %97 = vmatprep.subr.mxu0 0.0
    %98 = vmatpush1.msra.mxu0 0.0
    %99 = vmatprep.subr.mxu0 0.0
    %100 = vmatpush1.msra.mxu0 0.0
    %101 = vmatprep.subr.mxu0 0.0
    %102 = vmatpush1.msra.mxu0 0.0
    %103 = vmatprep.subr.mxu0 0.0
    %104 = vmatpush1.msra.mxu0 0.0
    %105 = vmatprep.subr.mxu0 0.0
    %106 = vmatpush1.msra.mxu0 0.0
    %107 = vmatprep.subr.mxu0 0.0
    %108 = vmatpush1.msra.mxu0 0.0
    %109 = vmatprep.mubr.f32.mxu0 0.0
    %110 = vmatmul.mubr.f32.gmra.mrb[0].mxu0 %v43
    %v111 = vpop.f32.mrb[0].mxu0
    %v112 = vadd.f32 %v39, %v111
    %v113 = vpop.f32.mrb[0].mxu0
    %114 = vdwg.mxu0
    %115 = vst.msk [vmem:[#allocation2] sm:$0xff] %vm24, %v112
    // Predicated region
    $region18: #{tpu_custom_call.1} parent=1 // pred_check
      _
    $region19: #{tpu_custom_call.1} parent=1 // pred_check_branch
      %117 = sbr.rel (0) target = $region21
    $region20: #{tpu_custom_call.1} parent=1 // pred_region
      %s119 = ssub.s32 128, 128
      %120 = vsyncadd [#allocation3], %s119
      %s122 = sshll.u32 [#allocation2], 4
      %s123 = int_to_ptr.vmem [resolvable:$true] %s122
      %125 = dma.vmem_to_hbm [thread:$0]  %s123, 128, %s4, [#allocation3]
    $region21: #{tpu_custom_call.1} parent=1 // pred_fallthru
      _
    // Predicated region
    $region22: #{tpu_custom_call.1} parent=1 // pred_check
      _
    $region23: #{tpu_custom_call.1} parent=1 // pred_check_branch
      %127 = sbr.rel (0) target = $region25
    $region24: #{tpu_custom_call.1} parent=1 // pred_region
      %128 = dma.done [#allocation3], 128
    $region25: #{tpu_custom_call.1} parent=1 // pred_fallthru
      _
    %129 = vsyncpa [#allocation3], 1

// kernel: tpu_custom_call.1
$region0: #{tpu_custom_call.1}
  #allocation0 [shape = 'u32[]', space=smem, size = 0x4, offset = 0x4, fixed_abs, tag = 'smem constant byte address 0x4 - core index']
  #allocation1 [shape = 'u32[144,128]{1,0:T(1,128)}', space=vmem, size = 0x12000, scoped, tag = 'internal scratch']
  %s0 = inlined_call_operand.vmem [shape: f32[8,32], index: 0, kind: input, shape index: {}]
  %s1 = inlined_call_operand.vmem [shape: f32[8,32], index: 1, kind: input, shape index: {}]
  %s2 = inlined_call_operand.vmem [shape: f32[64,32], index: 2, kind: input, shape index: {}]
  %s3 = inlined_call_operand.vmem [shape: f32[1,32], index: 3, kind: input, shape index: {}]
  %s4 = inlined_call_operand.hbm [shape: f32[8,32], index: 4, kind: output, shape index: {}]
  %s5 = sld [smem:[#allocation0]]
  $region26: #{tpu_custom_call.1} parent=0
    _
  %s7 = ssub.s32 1, %s5
  %s8 = scalar_select 0, %s7, %s5
  $region1: #{tpu_custom_call.1} parent=0
    #allocation2 [shape = 'u8[4096]{0}', space=vmem, size = 0x1000, scoped, tag = 'output window, operand 0, single buffered']
    #allocation3 [shape = 's32[1]{0}', space=sflag, size = 0x4, scoped, tag = 'scoped memory for tpu_custom_call.1']
    %9 = vsyncpa [#allocation3], 0
    // Predicated region
    $region2: #{tpu_custom_call.1} parent=1 // pred_check
      _
    $region3: #{tpu_custom_call.1} parent=1 // pred_check_branch
      %11 = sbr.rel (0) target = $region5
    $region4: #{tpu_custom_call.1} parent=1 // pred_region
      _
    $region5: #{tpu_custom_call.1} parent=1 // pred_fallthru
      _
    // Predicated region
    $region6: #{tpu_custom_call.1} parent=1 // pred_check
      _
    $region7: #{tpu_custom_call.1} parent=1 // pred_check_branch
      %13 = sbr.rel (0) target = $region9
    $region8: #{tpu_custom_call.1} parent=1 // pred_region
      _
    $region9: #{tpu_custom_call.1} parent=1 // pred_fallthru
      _
    // Predicated region
    $region10: #{tpu_custom_call.1} parent=1 // pred_check
      _
    $region11: #{tpu_custom_call.1} parent=1 // pred_check_branch
      %15 = sbr.rel (0) target = $region13
    $region12: #{tpu_custom_call.1} parent=1 // pred_region
      _
    $region13: #{tpu_custom_call.1} parent=1 // pred_fallthru
      _
    // Predicated region
    $region14: #{tpu_custom_call.1} parent=1 // pred_check
      _
    $region15: #{tpu_custom_call.1} parent=1 // pred_check_branch
      %17 = sbr.rel (0) target = $region17
    $region16: #{tpu_custom_call.1} parent=1 // pred_region
      _
    $region17: #{tpu_custom_call.1} parent=1 // pred_fallthru
      _
    %v18 = vld [vmem:[%s0] sm:$0xff]
    %v19 = vld [vmem:[%s2] sm:$0xff]
    %v20 = vld [vmem:[%s2 + $0x8] sm:$0xff]
    %v21 = vld [vmem:[%s2 + $0x10] sm:$0xff]
    %v22 = vld [vmem:[%s2 + $0x18] sm:$0xff]
    %v23 = vld [vmem:[%s1] sm:$0xff]
    %v24 = vld [vmem:[%s2 + $0x20] sm:$0xff]
    %v25 = vld [vmem:[%s2 + $0x28] sm:$0xff]
    %v26 = vld [vmem:[%s2 + $0x30] sm:$0xff]
    %v27 = vld [vmem:[%s2 + $0x38] sm:$0xff]
    %vm28 = vcmask 261120
    %v30 = vsel %vm28, %v23, 0
    %32 = vmatprep.subr.mxu0 0.0
    %33 = vmatpush1.msra.mxu0 %v24
    %34 = vmatprep.subr.mxu0 0.0
    %35 = vmatpush1.msra.mxu0 %v25
    %36 = vmatprep.subr.mxu0 0.0
    %37 = vmatpush1.msra.mxu0 %v26
    %38 = vmatprep.subr.mxu0 0.0
    %39 = vmatpush1.msra.mxu0 %v27
    %40 = vmatprep.subr.mxu0 0.0
    %41 = vmatpush1.msra.mxu0 0.0
    %42 = vmatprep.subr.mxu0 0.0
    %43 = vmatpush1.msra.mxu0 0.0
    %44 = vmatprep.subr.mxu0 0.0
    %45 = vmatpush1.msra.mxu0 0.0
    %46 = vmatprep.subr.mxu0 0.0
    %47 = vmatpush1.msra.mxu0 0.0
    %48 = vmatprep.subr.mxu0 0.0
    %49 = vmatpush1.msra.mxu0 0.0
    %50 = vmatprep.subr.mxu0 0.0
    %51 = vmatpush1.msra.mxu0 0.0
    %52 = vmatprep.subr.mxu0 0.0
    %53 = vmatpush1.msra.mxu0 0.0
    %54 = vmatprep.subr.mxu0 0.0
    %55 = vmatpush1.msra.mxu0 0.0
    %56 = vmatprep.subr.mxu0 0.0
    %57 = vmatpush1.msra.mxu0 0.0
    %58 = vmatprep.subr.mxu0 0.0
    %59 = vmatpush1.msra.mxu0 0.0
    %60 = vmatprep.subr.mxu0 0.0
    %61 = vmatpush1.msra.mxu0 0.0
    %62 = vmatprep.subr.mxu0 0.0
    %63 = vmatpush1.msra.mxu0 0.0
    %64 = vmatprep.subr.mxu0 0.0
    %65 = vmatpush1.msra.mxu0 0.0
    %66 = vmatprep.subr.mxu0 0.0
    %67 = vmatpush1.msra.mxu0 0.0
    %68 = vmatprep.subr.mxu0 0.0
    %69 = vmatpush1.msra.mxu0 0.0
    %70 = vmatprep.subr.mxu0 0.0
    %71 = vmatpush1.msra.mxu0 0.0
    %72 = vmatprep.subr.mxu0 0.0
    %73 = vmatpush1.msra.mxu0 0.0
    %74 = vmatprep.subr.mxu0 0.0
    %75 = vmatpush1.msra.mxu0 0.0
    %76 = vmatprep.subr.mxu0 0.0
    %77 = vmatpush1.msra.mxu0 0.0
    %78 = vmatprep.subr.mxu0 0.0
    %79 = vmatpush1.msra.mxu0 0.0
    %80 = vmatprep.subr.mxu0 0.0
    %81 = vmatpush1.msra.mxu0 0.0
    %82 = vmatprep.subr.mxu0 0.0
    %83 = vmatpush1.msra.mxu0 0.0
    %84 = vmatprep.subr.mxu0 0.0
    %85 = vmatpush1.msra.mxu0 0.0
    %86 = vmatprep.subr.mxu0 0.0
    %87 = vmatpush1.msra.mxu0 0.0
    %88 = vmatprep.subr.mxu0 0.0
    %89 = vmatpush1.msra.mxu0 0.0
    %90 = vmatprep.subr.mxu0 0.0
    %91 = vmatpush1.msra.mxu0 0.0
    %92 = vmatprep.subr.mxu0 0.0
    %93 = vmatpush1.msra.mxu0 0.0
    %94 = vmatprep.subr.mxu0 0.0
    %95 = vmatpush1.msra.mxu0 0.0
    %96 = vmatprep.mubr.f32.mxu0 0.0
    %97 = vmatmul.mubr.f32.gmra.mrb[0].mxu0 %v30
    %v98 = vpop.f32.mrb[0].mxu0
    %v99 = vadd.f32 0.0, %v98
    %v100 = vpop.f32.mrb[0].mxu0
    %101 = vdwg.mxu0
    %v103 = vsel %vm28, %v18, 0
    %105 = vmatprep.subr.mxu0 0.0
    %106 = vmatpush1.msra.mxu0 %v19
    %107 = vmatprep.subr.mxu0 0.0
    %108 = vmatpush1.msra.mxu0 %v20
    %109 = vmatprep.subr.mxu0 0.0
    %110 = vmatpush1.msra.mxu0 %v21
    %111 = vmatprep.subr.mxu0 0.0
    %112 = vmatpush1.msra.mxu0 %v22
    %113 = vmatprep.subr.mxu0 0.0
    %114 = vmatpush1.msra.mxu0 0.0
    %115 = vmatprep.subr.mxu0 0.0
    %116 = vmatpush1.msra.mxu0 0.0
    %117 = vmatprep.subr.mxu0 0.0
    %118 = vmatpush1.msra.mxu0 0.0
    %119 = vmatprep.subr.mxu0 0.0
    %120 = vmatpush1.msra.mxu0 0.0
    %121 = vmatprep.subr.mxu0 0.0
    %122 = vmatpush1.msra.mxu0 0.0
    %123 = vmatprep.subr.mxu0 0.0
    %124 = vmatpush1.msra.mxu0 0.0
    %125 = vmatprep.subr.mxu0 0.0
    %126 = vmatpush1.msra.mxu0 0.0
    %127 = vmatprep.subr.mxu0 0.0
    %128 = vmatpush1.msra.mxu0 0.0
    %129 = vmatprep.subr.mxu0 0.0
    %130 = vmatpush1.msra.mxu0 0.0
    %131 = vmatprep.subr.mxu0 0.0
    %132 = vmatpush1.msra.mxu0 0.0
    %133 = vmatprep.subr.mxu0 0.0
    %134 = vmatpush1.msra.mxu0 0.0
    %135 = vmatprep.subr.mxu0 0.0
    %136 = vmatpush1.msra.mxu0 0.0
    %137 = vmatprep.subr.mxu0 0.0
    %138 = vmatpush1.msra.mxu0 0.0
    %139 = vmatprep.subr.mxu0 0.0
    %140 = vmatpush1.msra.mxu0 0.0
    %141 = vmatprep.subr.mxu0 0.0
    %142 = vmatpush1.msra.mxu0 0.0
    %143 = vmatprep.subr.mxu0 0.0
    %144 = vmatpush1.msra.mxu0 0.0
    %145 = vmatprep.subr.mxu0 0.0
    %146 = vmatpush1.msra.mxu0 0.0
    %147 = vmatprep.subr.mxu0 0.0
    %148 = vmatpush1.msra.mxu0 0.0
    %149 = vmatprep.subr.mxu0 0.0
    %150 = vmatpush1.msra.mxu0 0.0
    %151 = vmatprep.subr.mxu0 0.0
    %152 = vmatpush1.msra.mxu0 0.0
    %153 = vmatprep.subr.mxu0 0.0
    %154 = vmatpush1.msra.mxu0 0.0
    %155 = vmatprep.subr.mxu0 0.0
    %156 = vmatpush1.msra.mxu0 0.0
    %157 = vmatprep.subr.mxu0 0.0
    %158 = vmatpush1.msra.mxu0 0.0
    %159 = vmatprep.subr.mxu0 0.0
    %160 = vmatpush1.msra.mxu0 0.0
    %161 = vmatprep.subr.mxu0 0.0
    %162 = vmatpush1.msra.mxu0 0.0
    %163 = vmatprep.subr.mxu0 0.0
    %164 = vmatpush1.msra.mxu0 0.0
    %165 = vmatprep.subr.mxu0 0.0
    %166 = vmatpush1.msra.mxu0 0.0
    %167 = vmatprep.subr.mxu0 0.0
    %168 = vmatpush1.msra.mxu0 0.0
    %169 = vmatprep.mubr.f32.mxu0 0.0
    %170 = vmatmul.mubr.f32.gmra.mrb[0].mxu0 %v103
    %v171 = vpop.f32.mrb[0].mxu0
    %v172 = vadd.f32 %v99, %v171
    %v173 = vpop.f32.mrb[0].mxu0
    %174 = vdwg.mxu0
    %v175 = vld [vmem:[%s3] sm:$0x1]
    %v177 = vlaneseq
    %v178 = vshrl.u32 %v177, 7
    %v179 = vsub.s32 0, %v178
    %v180 = vrot.slane %v175, %v179
    %v182 = vadd.f32 %v172, %v180
    %183 = vst.msk [vmem:[#allocation2] sm:$0xff] %vm28, %v182
    // Predicated region
    $region18: #{tpu_custom_call.1} parent=1 // pred_check
      _
    $region19: #{tpu_custom_call.1} parent=1 // pred_check_branch
      %185 = sbr.rel (0) target = $region21
    $region20: #{tpu_custom_call.1} parent=1 // pred_region
      %s187 = ssub.s32 128, 128
      %188 = vsyncadd [#allocation3], %s187
      %s190 = sshll.u32 [#allocation2], 4
      %s191 = int_to_ptr.vmem [resolvable:$true] %s190
      %193 = dma.vmem_to_hbm [thread:$0]  %s191, 128, %s4, [#allocation3]
    $region21: #{tpu_custom_call.1} parent=1 // pred_fallthru
      _
    // Predicated region
    $region22: #{tpu_custom_call.1} parent=1 // pred_check
      _
    $region23: #{tpu_custom_call.1} parent=1 // pred_check_branch
      %195 = sbr.rel (0) target = $region25
    $region24: #{tpu_custom_call.1} parent=1 // pred_region
      %196 = dma.done [#allocation3], 128
    $region25: #{tpu_custom_call.1} parent=1 // pred_fallthru
      _
    %197 = vsyncpa [#allocation3], 1

</llo_original>
